<compile_context>
chip_gen: v6e
topology: v6e:2x2x1
jax: 0.10.0
libtpu: 0.0.40
codegen_flags: <defaults>
</compile_context>

<pallas_src>
import functools

import jax
import jax.numpy as jnp
from jax.experimental import pallas as pl
from jax.experimental.pallas import tpu as pltpu

LANE = 128


def _round_up(n, m):
    return ((n + m - 1) // m) * m


def _pad_to(a, shape):
    return jnp.pad(a, [(0, t - s) for s, t in zip(a.shape, shape)])


def _mlp_kernel(x_ref, w1_ref, b1_ref, w2_ref, b2_ref, w3_ref, b3_ref, o_ref):
    # One batch tile per grid step; all three (lane-padded) layers run
    # back-to-back on the MXU with f32 accumulation. Bias-add / ReLU in f32
    # (v5e VPU has no bf16 path). The final store writes only the first O
    # lanes (narrow output block), so no padded output ever reaches HBM.
    cdt = w1_ref.dtype                                   # MXU operand dtype (f32 or bf16)
    o_cols = o_ref.shape[1]                              # static O (e.g. 8)

    x = x_ref[...].astype(cdt)                           # (TB, I)
    h1 = jnp.dot(x, w1_ref[...], preferred_element_type=jnp.float32)
    h1 = jnp.maximum(h1 + b1_ref[...], 0.0)              # (TB, HP)  f32 elementwise

    h2 = jnp.dot(h1.astype(cdt), w2_ref[...], preferred_element_type=jnp.float32)
    h2 = jnp.maximum(h2 + b2_ref[...], 0.0)              # (TB, HP)

    out = jnp.dot(h2.astype(cdt), w3_ref[...], preferred_element_type=jnp.float32)
    out = out + b3_ref[...]                              # (TB, OP) f32
    o_ref[...] = out[:, :o_cols].astype(o_ref.dtype)     # narrow (TB, O) store


def prepare_params(params, compute_dtype=jnp.float32):
    """One-time layout prep (hoisted out of the per-call forward).

    Transposes PyTorch-convention (out, in) weights to (in, out), zero-pads the
    hidden/output feature dims to multiples of 128 lanes, and casts weights to
    the MXU compute dtype. bf16 operands are safe on v5e, v6e and v7x (the MXU
    is bf16-native everywhere; elementwise math stays f32 in the kernel).
    Biases stay f32. Zero padding keeps the first `output_size` columns
    bit-exact in f32.
    """
    I = params["w1"].shape[1]
    H = params["w1"].shape[0]
    O = params["w3"].shape[0]
    HP = _round_up(H, LANE)
    OP = _round_up(O, LANE)

    return {
        "w1t": _pad_to(params["w1"].T, (I, HP)).astype(compute_dtype),   # (I, HP)
        "b1":  _pad_to(params["b1"][None, :], (1, HP)).astype(jnp.float32),
        "w2t": _pad_to(params["w2"].T, (HP, HP)).astype(compute_dtype),  # (HP, HP)
        "b2":  _pad_to(params["b2"][None, :], (1, HP)).astype(jnp.float32),
        "w3t": _pad_to(params["w3"].T, (HP, OP)).astype(compute_dtype),  # (HP, OP)
        "b3":  _pad_to(params["b3"][None, :], (1, OP)).astype(jnp.float32),
        "input_size": I,
        "output_size": O,
    }


def emotion_mlp_forward(x, prepped, *, block_batch=2048, out_dtype=jnp.float32):
    """Forward pass of EmotionMLP using prepared (padded / transposed) params.

    x: (B, input_size).  Pass bf16 x / request bf16 out_dtype on v6e/v7x (and
    v5e) when downstream tolerates it -- halves the HBM bytes that bind here.
    """
    w1t, b1 = prepped["w1t"], prepped["b1"]
    w2t, b2 = prepped["w2t"], prepped["b2"]
    w3t, b3 = prepped["w3t"], prepped["b3"]
    O = prepped["output_size"]

    B, I = x.shape
    HP = w1t.shape[1]
    OP = w3t.shape[1]

    # Batch tile: large enough to amortize per-step overhead, capped so the
    # grid has >=4 steps (both v7x TensorCores get work). No HBM-side padding
    # of x: pl.cdiv grid + ragged last block handled by Pallas.
    tb = min(block_batch, max(8, _round_up(pl.cdiv(B, 4), 8)))
    grid = (pl.cdiv(B, tb),)

    out = pl.pallas_call(
        _mlp_kernel,
        out_shape=jax.ShapeDtypeStruct((B, O), out_dtype),   # narrow output, no wrapper slice
        grid=grid,
        in_specs=[
            pl.BlockSpec((tb, I), lambda i: (i, 0)),    # x: tiled over batch
            pl.BlockSpec((I, HP), lambda i: (0, 0)),    # weights / biases stay
            pl.BlockSpec((1, HP), lambda i: (0, 0)),    #   VMEM-resident across
            pl.BlockSpec((HP, HP), lambda i: (0, 0)),   #   all grid steps
            pl.BlockSpec((1, HP), lambda i: (0, 0)),
            pl.BlockSpec((HP, OP), lambda i: (0, 0)),
            pl.BlockSpec((1, OP), lambda i: (0, 0)),
        ],
        out_specs=pl.BlockSpec((tb, O), lambda i: (i, 0)),   # last dim == full dim -> legal
        compiler_params=pltpu.CompilerParams(
            dimension_semantics=("parallel",),          # shards batch across v7x's 2 TCs
            vmem_limit_bytes=32 * 1024 * 1024,          # well under v7x 64 MiB
        ),
    )(x, w1t, b1, w2t, b2, w3t, b3)

    return out


def init_params(key, input_size, hidden_size, output_size, dtype=jnp.float32):
    """Deterministic parameter init (PyTorch nn.Linear weight shape convention)."""
    ks = jax.random.split(key, 6)

    def u(k, shape, fan_in):
        bound = 1.0 / jnp.sqrt(fan_in)
        return jax.random.uniform(k, shape, dtype, minval=-bound, maxval=bound)

    return {
        "w1": u(ks[0], (hidden_size, input_size), input_size),
        "b1": u(ks[1], (hidden_size,), input_size),
        "w2": u(ks[2], (hidden_size, hidden_size), hidden_size),
        "b2": u(ks[3], (hidden_size,), hidden_size),
        "w3": u(ks[4], (output_size, hidden_size), hidden_size),
        "b3": u(ks[5], (output_size,), hidden_size),
    }


def _reference_forward(x, p):
    h1 = jnp.maximum(x @ p["w1"].T + p["b1"], 0.0)
    h2 = jnp.maximum(h1 @ p["w2"].T + p["b2"], 0.0)
    return h2 @ p["w3"].T + p["b3"]


if __name__ == "__main__":
    # Module-consistent small feature sizes; batch chosen to exercise the
    # batch grid (4 tiles of 64 rows with the >=4-step cap).
    B, I, H, O = 256, 32, 32, 8

    key = jax.random.PRNGKey(0)
    k_x, k_p = jax.random.split(key)
    x = jax.random.normal(k_x, (B, I), dtype=jnp.float32)
    params = init_params(k_p, I, H, O)
    ref = _reference_forward(x, params)

    # f32 path: bit-accurate padding, tight tolerance vs. reference.
    prepped_f32 = prepare_params(params, compute_dtype=jnp.float32)
    out = jax.block_until_ready(emotion_mlp_forward(x, prepped_f32))
    assert out.shape == (B, O)
    assert jnp.allclose(out, ref, atol=1e-5, rtol=1e-5), "f32 mismatch vs reference"

    # Full bf16 DMA path (all generations): x cast at the producer, bf16
    # weights, bf16 output; accumulation stays f32. Loose tolerance.
    prepped_bf16 = prepare_params(params, compute_dtype=jnp.bfloat16)
    x_bf16 = x.astype(jnp.bfloat16)
    out_bf16 = jax.block_until_ready(
        emotion_mlp_forward(x_bf16, prepped_bf16, out_dtype=jnp.bfloat16))
    assert out_bf16.shape == (B, O)
    assert jnp.allclose(out_bf16.astype(jnp.float32), ref, atol=1e-1, rtol=1e-1), \
        "bf16 mismatch vs reference"

    print("KERNEL_OK")
</pallas_src>

<mosaic_0001>
module attributes {stable_mosaic.version = 11 : i64} {
  func.func @_mlp_kernel(%arg0: i32, %arg1: memref<64x32xf32, #tpu.memory_space<vmem>>, %arg2: memref<32x128xf32, #tpu.memory_space<vmem>>, %arg3: memref<1x128xf32, #tpu.memory_space<vmem>>, %arg4: memref<128x128xf32, #tpu.memory_space<vmem>>, %arg5: memref<1x128xf32, #tpu.memory_space<vmem>>, %arg6: memref<128x128xf32, #tpu.memory_space<vmem>>, %arg7: memref<1x128xf32, #tpu.memory_space<vmem>>, %arg8: memref<64x8xf32, #tpu.memory_space<vmem>>) attributes {dimension_semantics = [#tpu.dimension_semantics<parallel>], iteration_bounds = array<i64: 4>, scalar_prefetch = 0 : i64, scratch_operands = 0 : i64, tpu.core_type = #tpu.core_type<tc>, window_params = [{transform_indices = @transform_0, window_bounds = array<i64: 64, 32>}, {pipeline_mode = #tpu.pipeline_mode<synchronous>, transform_indices = @transform_1, window_bounds = array<i64: 32, 128>}, {pipeline_mode = #tpu.pipeline_mode<synchronous>, transform_indices = @transform_2, window_bounds = array<i64: 1, 128>}, {pipeline_mode = #tpu.pipeline_mode<synchronous>, transform_indices = @transform_3, window_bounds = array<i64: 128, 128>}, {pipeline_mode = #tpu.pipeline_mode<synchronous>, transform_indices = @transform_4, window_bounds = array<i64: 1, 128>}, {pipeline_mode = #tpu.pipeline_mode<synchronous>, transform_indices = @transform_5, window_bounds = array<i64: 128, 128>}, {pipeline_mode = #tpu.pipeline_mode<synchronous>, transform_indices = @transform_6, window_bounds = array<i64: 1, 128>}, {transform_indices = @transform_7, window_bounds = array<i64: 64, 8>}]} {
    %c0 = arith.constant 0 : index
    %c0_0 = arith.constant 0 : index
    %0 = vector.load %arg1[%c0, %c0_0] : memref<64x32xf32, #tpu.memory_space<vmem>>, vector<64x32xf32>
    %c0_1 = arith.constant 0 : index
    %c0_2 = arith.constant 0 : index
    %1 = vector.load %arg2[%c0_1, %c0_2] : memref<32x128xf32, #tpu.memory_space<vmem>>, vector<32x128xf32>
    %cst = arith.constant dense<0.000000e+00> : vector<64x128xf32>
    %2 = tpu.matmul %0, %1, %cst {dimension_numbers = #tpu.dot_dimension_numbers<[1], [0], [0], [1], [0, 0, 1, 1], [], []>} : vector<64x32xf32>, vector<32x128xf32>, vector<64x128xf32> -> vector<64x128xf32>
    %c0_3 = arith.constant 0 : index
    %c0_4 = arith.constant 0 : index
    %3 = vector.load %arg3[%c0_3, %c0_4] : memref<1x128xf32, #tpu.memory_space<vmem>>, vector<1x128xf32>
    %4 = vector.broadcast %3 : vector<1x128xf32> to vector<64x128xf32>
    %5 = arith.addf %2, %4 : vector<64x128xf32>
    %cst_5 = arith.constant 0.000000e+00 : f32
    %6 = vector.broadcast %cst_5 : f32 to vector<64x128xf32>
    %7 = arith.maximumf %5, %6 : vector<64x128xf32>
    %c0_6 = arith.constant 0 : index
    %c0_7 = arith.constant 0 : index
    %8 = vector.load %arg4[%c0_6, %c0_7] : memref<128x128xf32, #tpu.memory_space<vmem>>, vector<128x128xf32>
    %cst_8 = arith.constant dense<0.000000e+00> : vector<64x128xf32>
    %9 = tpu.matmul %7, %8, %cst_8 {dimension_numbers = #tpu.dot_dimension_numbers<[1], [0], [0], [1], [0, 0, 1, 1], [], []>} : vector<64x128xf32>, vector<128x128xf32>, vector<64x128xf32> -> vector<64x128xf32>
    %c0_9 = arith.constant 0 : index
    %c0_10 = arith.constant 0 : index
    %10 = vector.load %arg5[%c0_9, %c0_10] : memref<1x128xf32, #tpu.memory_space<vmem>>, vector<1x128xf32>
    %11 = vector.broadcast %10 : vector<1x128xf32> to vector<64x128xf32>
    %12 = arith.addf %9, %11 : vector<64x128xf32>
    %cst_11 = arith.constant 0.000000e+00 : f32
    %13 = vector.broadcast %cst_11 : f32 to vector<64x128xf32>
    %14 = arith.maximumf %12, %13 : vector<64x128xf32>
    %c0_12 = arith.constant 0 : index
    %c0_13 = arith.constant 0 : index
    %15 = vector.load %arg6[%c0_12, %c0_13] : memref<128x128xf32, #tpu.memory_space<vmem>>, vector<128x128xf32>
    %cst_14 = arith.constant dense<0.000000e+00> : vector<64x128xf32>
    %16 = tpu.matmul %14, %15, %cst_14 {dimension_numbers = #tpu.dot_dimension_numbers<[1], [0], [0], [1], [0, 0, 1, 1], [], []>} : vector<64x128xf32>, vector<128x128xf32>, vector<64x128xf32> -> vector<64x128xf32>
    %c0_15 = arith.constant 0 : index
    %c0_16 = arith.constant 0 : index
    %17 = vector.load %arg7[%c0_15, %c0_16] : memref<1x128xf32, #tpu.memory_space<vmem>>, vector<1x128xf32>
    %18 = vector.broadcast %17 : vector<1x128xf32> to vector<64x128xf32>
    %19 = arith.addf %16, %18 : vector<64x128xf32>
    %20 = vector.extract_strided_slice %19 {offsets = [0, 0], sizes = [64, 8], strides = [1, 1]} : vector<64x128xf32> to vector<64x8xf32>
    %c0_17 = arith.constant 0 : index
    %c0_18 = arith.constant 0 : index
    %21 = vector.load %arg8[%c0_17, %c0_18] : memref<64x8xf32, #tpu.memory_space<vmem>>, vector<64x8xf32>
    tpu.vector_store %arg8[%c0_17, %c0_18], %20 {strides = array<i32>} : memref<64x8xf32, #tpu.memory_space<vmem>>, vector<64x8xf32>,
    return
  }
  func.func @transform_0(%arg0: i32) -> (i32, i32) {
    %c0_i32 = arith.constant 0 : i32
    %c0_i32_0 = arith.constant 0 : i32
    return %arg0, %c0_i32 : i32, i32
  }
  func.func @transform_1(%arg0: i32) -> (i32, i32) {
    %c0_i32 = arith.constant 0 : i32
    %c0_i32_0 = arith.constant 0 : i32
    %c0_i32_1 = arith.constant 0 : i32
    return %c0_i32, %c0_i32_0 : i32, i32
  }
  func.func @transform_2(%arg0: i32) -> (i32, i32) {
    %c0_i32 = arith.constant 0 : i32
    %c0_i32_0 = arith.constant 0 : i32
    %c0_i32_1 = arith.constant 0 : i32
    return %c0_i32, %c0_i32_0 : i32, i32
  }
  func.func @transform_3(%arg0: i32) -> (i32, i32) {
    %c0_i32 = arith.constant 0 : i32
    %c0_i32_0 = arith.constant 0 : i32
    %c0_i32_1 = arith.constant 0 : i32
    return %c0_i32, %c0_i32_0 : i32, i32
  }
  func.func @transform_4(%arg0: i32) -> (i32, i32) {
    %c0_i32 = arith.constant 0 : i32
    %c0_i32_0 = arith.constant 0 : i32
    %c0_i32_1 = arith.constant 0 : i32
    return %c0_i32, %c0_i32_0 : i32, i32
  }
  func.func @transform_5(%arg0: i32) -> (i32, i32) {
    %c0_i32 = arith.constant 0 : i32
    %c0_i32_0 = arith.constant 0 : i32
    %c0_i32_1 = arith.constant 0 : i32
    return %c0_i32, %c0_i32_0 : i32, i32
  }
  func.func @transform_6(%arg0: i32) -> (i32, i32) {
    %c0_i32 = arith.constant 0 : i32
    %c0_i32_0 = arith.constant 0 : i32
    %c0_i32_1 = arith.constant 0 : i32
    return %c0_i32, %c0_i32_0 : i32, i32
  }
  func.func @transform_7(%arg0: i32) -> (i32, i32) {
    %c0_i32 = arith.constant 0 : i32
    %c0_i32_0 = arith.constant 0 : i32
    return %arg0, %c0_i32 : i32, i32
  }
}

</mosaic_0001>

<llo_original>
// kernel: tpu_custom_call.1
$region0: #{tpu_custom_call.1}
  #allocation0 [shape = 'u32[]', space=smem, size = 0x4, offset = 0x4, fixed_abs, tag = 'smem constant byte address 0x4 - core index']
  #allocation1 [shape = 'u32[144,128]{1,0:T(1,128)}', space=vmem, size = 0x12000, scoped, tag = 'internal scratch']
  %s0 = inlined_call_operand.vmem [shape: f32[256,32], index: 0, kind: input, shape index: {}]
  %s1 = inlined_call_operand.vmem [shape: f32[32,128], index: 1, kind: input, shape index: {}]
  %s2 = inlined_call_operand.vmem [shape: f32[1,128], index: 2, kind: input, shape index: {}]
  %s3 = inlined_call_operand.vmem [shape: f32[128,128], index: 3, kind: input, shape index: {}]
  %s4 = inlined_call_operand.vmem [shape: f32[1,128], index: 4, kind: input, shape index: {}]
  %s5 = inlined_call_operand.vmem [shape: f32[128,128], index: 5, kind: input, shape index: {}]
  %s6 = inlined_call_operand.vmem [shape: f32[1,128], index: 6, kind: input, shape index: {}]
  %s7 = inlined_call_operand.vmem [shape: f32[256,8], index: 7, kind: output, shape index: {}]
  %s8 = sld [smem:[#allocation0]]
  $region61: #{tpu_custom_call.1} parent=0
    _
  %s10 = ssub.s32 1, %s8
  %s11 = scalar_select 0, %s10, %s8
  loop: start=0, step=1, limit=6
  $region2: #{tpu_custom_call.1} parent=0 // loop_pre_header
    _
  $region3: #{tpu_custom_call.1} parent=0 // loop_header
    %s13 = sphi 0, %s17
    %p14 = scmp.ge.s32.totalorder %s13, 6
    %s23 = sphi 0, %s25
    %s26 = sphi 0, %s23
    %s27 = sphi 0, %s26
    %s43 = sphi 0, %s27
    %s47 = sphi 0, %s47
    %s49 = sphi 0, %s47
    %s50 = sphi 0, %s49
    %s64 = sphi 0, %s50
    %s68 = sphi 0, %s68
    %s70 = sphi 0, %s68
    %s71 = sphi 0, %s70
    %s85 = sphi 0, %s71
    %s89 = sphi 0, %s89
    %s91 = sphi 0, %s89
    %s92 = sphi 0, %s91
    %s106 = sphi 0, %s92
    %s110 = sphi 0, %s110
    %s112 = sphi 0, %s110
    %s113 = sphi 0, %s112
    %s127 = sphi 0, %s113
    %s131 = sphi 0, %s131
    %s133 = sphi 0, %s131
    %s134 = sphi 0, %s133
    %s148 = sphi 0, %s134
    %s152 = sphi 0, %s152
    %s154 = sphi 0, %s152
    %s155 = sphi 0, %s154
    %s169 = sphi 0, %s155
    %s175 = sphi 0, %s177
    %s178 = sphi 0, %s175
    %s179 = sphi 0, %s178
    %s195 = sphi 0, %s179
  $region4: #{tpu_custom_call.1} parent=0 // loop_header_branch
    %16 = sbr.rel (%p14) target = $region8
  $region5: #{tpu_custom_call.1} parent=0 // loop_body
    %s18 = ssub.s32 %s13, 1
    %s19 = ssub.s32 %s13, 2
    %s20 = sadd.s32 %s13, 1
    %s21 = ssub.s32 %s13, %s20
    %p22 = scmp.eq.s32.totalorder %s21, 0
    %s24 = sadd.s32 %s23, 1
    %s25 = scalar_select %p22, %s23, %s24
    %p28 = pneg %p22
    %p29 = scmp.eq.s32.totalorder %s13, 3
    %p30 = por %p28, %p29
    %p31 = scmp.ne.s32.totalorder %s23, %s26
    %p32 = scmp.eq.s32.totalorder %s13, 0
    %p33 = por %p31, %p32
    %p34 = scmp.ne.s32.totalorder %s23, %s26
    %p35 = scmp.eq.s32.totalorder %s18, 3
    %p36 = por %p34, %p35
    %p37 = scmp.ne.s32.totalorder %s26, %s27
    %p38 = scmp.eq.s32.totalorder %s18, 0
    %p39 = por %p37, %p38
    %p40 = scmp.ne.s32.totalorder %s26, %s27
    %p41 = scmp.eq.s32.totalorder %s19, 3
    %p42 = por %p40, %p41
    %p44 = scmp.ne.s32.totalorder %s27, %s43
    %p45 = scmp.eq.s32.totalorder %s19, 0
    %p46 = por %p44, %p45
    %s48 = sadd.s32 %s47, 1
    %p51 = scmp.eq.s32.totalorder %s13, 3
    %p52 = scmp.ne.s32.totalorder %s47, %s49
    %p53 = scmp.eq.s32.totalorder %s13, 0
    %p54 = por %p52, %p53
    %p55 = scmp.ne.s32.totalorder %s47, %s49
    %p56 = scmp.eq.s32.totalorder %s18, 3
    %p57 = por %p55, %p56
    %p58 = scmp.ne.s32.totalorder %s49, %s50
    %p59 = scmp.eq.s32.totalorder %s18, 0
    %p60 = por %p58, %p59
    %p61 = scmp.ne.s32.totalorder %s49, %s50
    %p62 = scmp.eq.s32.totalorder %s19, 3
    %p63 = por %p61, %p62
    %p65 = scmp.ne.s32.totalorder %s50, %s64
    %p66 = scmp.eq.s32.totalorder %s19, 0
    %p67 = por %p65, %p66
    %s69 = sadd.s32 %s68, 1
    %p72 = scmp.eq.s32.totalorder %s13, 3
    %p73 = scmp.ne.s32.totalorder %s68, %s70
    %p74 = scmp.eq.s32.totalorder %s13, 0
    %p75 = por %p73, %p74
    %p76 = scmp.ne.s32.totalorder %s68, %s70
    %p77 = scmp.eq.s32.totalorder %s18, 3
    %p78 = por %p76, %p77
    %p79 = scmp.ne.s32.totalorder %s70, %s71
    %p80 = scmp.eq.s32.totalorder %s18, 0
    %p81 = por %p79, %p80
    %p82 = scmp.ne.s32.totalorder %s70, %s71
    %p83 = scmp.eq.s32.totalorder %s19, 3
    %p84 = por %p82, %p83
    %p86 = scmp.ne.s32.totalorder %s71, %s85
    %p87 = scmp.eq.s32.totalorder %s19, 0
    %p88 = por %p86, %p87
    %s90 = sadd.s32 %s89, 1
    %p93 = scmp.eq.s32.totalorder %s13, 3
    %p94 = scmp.ne.s32.totalorder %s89, %s91
    %p95 = scmp.eq.s32.totalorder %s13, 0
    %p96 = por %p94, %p95
    %p97 = scmp.ne.s32.totalorder %s89, %s91
    %p98 = scmp.eq.s32.totalorder %s18, 3
    %p99 = por %p97, %p98
    %p100 = scmp.ne.s32.totalorder %s91, %s92
    %p101 = scmp.eq.s32.totalorder %s18, 0
    %p102 = por %p100, %p101
    %p103 = scmp.ne.s32.totalorder %s91, %s92
    %p104 = scmp.eq.s32.totalorder %s19, 3
    %p105 = por %p103, %p104
    %p107 = scmp.ne.s32.totalorder %s92, %s106
    %p108 = scmp.eq.s32.totalorder %s19, 0
    %p109 = por %p107, %p108
    %s111 = sadd.s32 %s110, 1
    %p114 = scmp.eq.s32.totalorder %s13, 3
    %p115 = scmp.ne.s32.totalorder %s110, %s112
    %p116 = scmp.eq.s32.totalorder %s13, 0
    %p117 = por %p115, %p116
    %p118 = scmp.ne.s32.totalorder %s110, %s112
    %p119 = scmp.eq.s32.totalorder %s18, 3
    %p120 = por %p118, %p119
    %p121 = scmp.ne.s32.totalorder %s112, %s113
    %p122 = scmp.eq.s32.totalorder %s18, 0
    %p123 = por %p121, %p122
    %p124 = scmp.ne.s32.totalorder %s112, %s113
    %p125 = scmp.eq.s32.totalorder %s19, 3
    %p126 = por %p124, %p125
    %p128 = scmp.ne.s32.totalorder %s113, %s127
    %p129 = scmp.eq.s32.totalorder %s19, 0
    %p130 = por %p128, %p129
    %s132 = sadd.s32 %s131, 1
    %p135 = scmp.eq.s32.totalorder %s13, 3
    %p136 = scmp.ne.s32.totalorder %s131, %s133
    %p137 = scmp.eq.s32.totalorder %s13, 0
    %p138 = por %p136, %p137
    %p139 = scmp.ne.s32.totalorder %s131, %s133
    %p140 = scmp.eq.s32.totalorder %s18, 3
    %p141 = por %p139, %p140
    %p142 = scmp.ne.s32.totalorder %s133, %s134
    %p143 = scmp.eq.s32.totalorder %s18, 0
    %p144 = por %p142, %p143
    %p145 = scmp.ne.s32.totalorder %s133, %s134
    %p146 = scmp.eq.s32.totalorder %s19, 3
    %p147 = por %p145, %p146
    %p149 = scmp.ne.s32.totalorder %s134, %s148
    %p150 = scmp.eq.s32.totalorder %s19, 0
    %p151 = por %p149, %p150
    %s153 = sadd.s32 %s152, 1
    %p156 = scmp.eq.s32.totalorder %s13, 3
    %p157 = scmp.ne.s32.totalorder %s152, %s154
    %p158 = scmp.eq.s32.totalorder %s13, 0
    %p159 = por %p157, %p158
    %p160 = scmp.ne.s32.totalorder %s152, %s154
    %p161 = scmp.eq.s32.totalorder %s18, 3
    %p162 = por %p160, %p161
    %p163 = scmp.ne.s32.totalorder %s154, %s155
    %p164 = scmp.eq.s32.totalorder %s18, 0
    %p165 = por %p163, %p164
    %p166 = scmp.ne.s32.totalorder %s154, %s155
    %p167 = scmp.eq.s32.totalorder %s19, 3
    %p168 = por %p166, %p167
    %p170 = scmp.ne.s32.totalorder %s155, %s169
    %p171 = scmp.eq.s32.totalorder %s19, 0
    %p172 = por %p170, %p171
    %s173 = ssub.s32 %s13, %s20
    %p174 = scmp.eq.s32.totalorder %s173, 0
    %s176 = sadd.s32 %s175, 1
    %s177 = scalar_select %p174, %s175, %s176
    %p180 = pneg %p174
    %p181 = scmp.eq.s32.totalorder %s13, 3
    %p182 = por %p180, %p181
    %p183 = scmp.ne.s32.totalorder %s175, %s178
    %p184 = scmp.eq.s32.totalorder %s13, 0
    %p185 = por %p183, %p184
    %p186 = scmp.ne.s32.totalorder %s175, %s178
    %p187 = scmp.eq.s32.totalorder %s18, 3
    %p188 = por %p186, %p187
    %p189 = scmp.ne.s32.totalorder %s178, %s179
    %p190 = scmp.eq.s32.totalorder %s18, 0
    %p191 = por %p189, %p190
    %p192 = scmp.ne.s32.totalorder %s178, %s179
    %p193 = scmp.eq.s32.totalorder %s19, 3
    %p194 = por %p192, %p193
    %p196 = scmp.ne.s32.totalorder %s179, %s195
    %p197 = scmp.eq.s32.totalorder %s19, 0
    %p198 = por %p196, %p197
    %p199 = scmp.le.s32.totalorder 1, %s13
    %p200 = scmp.lt.s32.totalorder %s13, 5
    %p201 = pnand %p199, %p200
    %p202 = pneg %p201
    // Predicated region
    $region9: #{tpu_custom_call.1} parent=5 // pred_check
      _
    $region10: #{tpu_custom_call.1} parent=5 // pred_check_branch
      %204 = sbr.rel (%p201) target = $region12
    $region11: #{tpu_custom_call.1} parent=5 // pred_region
      %s205 = ssub.s32 %s13, 1
      // Predicated region
      $region13: #{tpu_custom_call.1} parent=11 // pred_check
        %p206 = pneg %p60
      $region14: #{tpu_custom_call.1} parent=11 // pred_check_branch
        %208 = sbr.rel (%p206) target = $region16
      $region15: #{tpu_custom_call.1} parent=11 // pred_region
        _
      $region16: #{tpu_custom_call.1} parent=11 // pred_fallthru
        _
      // Predicated region
      $region17: #{tpu_custom_call.1} parent=11 // pred_check
        %p209 = pneg %p81
      $region18: #{tpu_custom_call.1} parent=11 // pred_check_branch
        %211 = sbr.rel (%p209) target = $region20
      $region19: #{tpu_custom_call.1} parent=11 // pred_region
        _
      $region20: #{tpu_custom_call.1} parent=11 // pred_fallthru
        _
      // Predicated region
      $region21: #{tpu_custom_call.1} parent=11 // pred_check
        %p212 = pneg %p102
      $region22: #{tpu_custom_call.1} parent=11 // pred_check_branch
        %214 = sbr.rel (%p212) target = $region24
      $region23: #{tpu_custom_call.1} parent=11 // pred_region
        _
      $region24: #{tpu_custom_call.1} parent=11 // pred_fallthru
        _
      // Predicated region
      $region25: #{tpu_custom_call.1} parent=11 // pred_check
        %p215 = pneg %p123
      $region26: #{tpu_custom_call.1} parent=11 // pred_check_branch
        %217 = sbr.rel (%p215) target = $region28
      $region27: #{tpu_custom_call.1} parent=11 // pred_region
        _
      $region28: #{tpu_custom_call.1} parent=11 // pred_fallthru
        _
      // Predicated region
      $region29: #{tpu_custom_call.1} parent=11 // pred_check
        %p218 = pneg %p144
      $region30: #{tpu_custom_call.1} parent=11 // pred_check_branch
        %220 = sbr.rel (%p218) target = $region32
      $region31: #{tpu_custom_call.1} parent=11 // pred_region
        _
      $region32: #{tpu_custom_call.1} parent=11 // pred_fallthru
        _
      // Predicated region
      $region33: #{tpu_custom_call.1} parent=11 // pred_check
        %p221 = pneg %p165
      $region34: #{tpu_custom_call.1} parent=11 // pred_check_branch
        %223 = sbr.rel (%p221) target = $region36
      $region35: #{tpu_custom_call.1} parent=11 // pred_region
        _
      $region36: #{tpu_custom_call.1} parent=11 // pred_fallthru
        _
    $region12: #{tpu_custom_call.1} parent=5 // pred_fallthru
      _
    %p224 = scmp.lt.s32.totalorder %s13, 4
    // Predicated region
    $region37: #{tpu_custom_call.1} parent=5 // pred_check
      %p225 = pneg %p224
    $region38: #{tpu_custom_call.1} parent=5 // pred_check_branch
      %227 = sbr.rel (%p225) target = $region40
    $region39: #{tpu_custom_call.1} parent=5 // pred_region
      // Predicated region
      $region41: #{tpu_custom_call.1} parent=39 // pred_check
        %p228 = pneg %p33
      $region42: #{tpu_custom_call.1} parent=39 // pred_check_branch
        %230 = sbr.rel (%p228) target = $region44
      $region43: #{tpu_custom_call.1} parent=39 // pred_region
        %s231 = smul.u32 8, %s13
        %p232 = scmp.lt.s32.totalorder %s231, 31
        %s233 = scalar_select %p232, %s231, 31
        %s234 = smul.addr %s233, 8
        %s235 = scalar_lea.vmem %s0, %s234
        %s236 = smul.u32 8, %s13
      $region44: #{tpu_custom_call.1} parent=39 // pred_fallthru
        _
    $region40: #{tpu_custom_call.1} parent=5 // pred_fallthru
      _
    %p237 = scmp.le.s32.totalorder 1, %s13
    %p238 = scmp.lt.s32.totalorder %s13, 5
    %p239 = pnand %p237, %p238
    %p240 = pneg %p239
    // Predicated region
    $region45: #{tpu_custom_call.1} parent=5 // pred_check
      _
    $region46: #{tpu_custom_call.1} parent=5 // pred_check_branch
      %242 = sbr.rel (%p239) target = $region48
    $region47: #{tpu_custom_call.1} parent=5 // pred_region
      %s243 = ssub.s32 %s13, 1
      %s244 = smul.u32 8, %s18
      %p245 = scmp.lt.s32.totalorder %s244, 31
      %s246 = scalar_select %p245, %s244, 31
      %s247 = smul.addr %s246, 8
      %s248 = scalar_lea.vmem %s0, %s247
      %p249 = pneg %p39
      %p250 = pneg %p36
      %p251 = pneg %p60
      %p252 = pneg %p57
      %p253 = pneg %p81
      %p254 = pneg %p78
      %p255 = pneg %p102
      %p256 = pneg %p99
      %p257 = pneg %p123
      %p258 = pneg %p120
      %p259 = pneg %p144
      %p260 = pneg %p141
      %p261 = pneg %p165
      %p262 = pneg %p162
      %p263 = pneg %p191
      %p264 = pneg %p188
      %s265 = smul.u32 8, %s18
      %p266 = scmp.lt.s32.totalorder %s265, 31
      %s267 = scalar_select %p266, %s265, 31
      %s268 = smul.addr %s267, 8
      %s269 = scalar_lea.vmem %s7, %s268
      %s270 = smul.u32 8, %s18
      %p271 = scmp.lt.s32.totalorder %s270, 31
      %s272 = scalar_select %p271, %s270, 31
      %s273 = smul.addr %s272, 8
      %s274 = scalar_lea.vmem %s0, %s273
      %s275 = smul.u32 8, %s18
      %s276 = smul.u32 8, %s18
      %p277 = scmp.lt.s32.totalorder %s276, 31
      %s278 = scalar_select %p277, %s276, 31
      %s279 = smul.addr %s278, 8
      %s280 = scalar_lea.vmem %s7, %s279
      %s281 = smul.u32 8, %s18
      %v282 = vld [vmem:[%s274] sm:$0xff]
      %v283 = vld [vmem:[%s274 + $0x8] sm:$0xff]
      %v284 = vld [vmem:[%s274 + $0x10] sm:$0xff]
      %v285 = vld [vmem:[%s274 + $0x18] sm:$0xff]
      %v286 = vld [vmem:[%s274 + $0x20] sm:$0xff]
      %v287 = vld [vmem:[%s274 + $0x28] sm:$0xff]
      %v288 = vld [vmem:[%s274 + $0x30] sm:$0xff]
      %v289 = vld [vmem:[%s274 + $0x38] sm:$0xff]
      %v290 = vld [vmem:[%s1] sm:$0xff]
      %v291 = vld [vmem:[%s1 + $0x8] sm:$0xff]
      %v292 = vld [vmem:[%s1 + $0x10] sm:$0xff]
      %v293 = vld [vmem:[%s1 + $0x18] sm:$0xff]
      %v294 = vld [vmem:[%s2] sm:$0x1]
      %v296 = vlaneseq
      %v297 = vshrl.u32 %v296, 7
      %v298 = vsub.s32 0, %v297
      %v299 = vrot.slane %v294, %v298
      %vm301 = vcmask 261120
      %v303 = vsel %vm301, %v282, 0
      %v306 = vsel %vm301, %v283, 0
      %v309 = vsel %vm301, %v284, 0
      %v312 = vsel %vm301, %v285, 0
      %v315 = vsel %vm301, %v286, 0
      %v318 = vsel %vm301, %v287, 0
      %v321 = vsel %vm301, %v288, 0
      %v324 = vsel %vm301, %v289, 0
      %326 = vmatprep.subr.mxu0 0.0
      %327 = vmatpush1.msra.mxu0 0.0
      %328 = vmatprep.subr.mxu0 0.0
      %329 = vmatpush1.msra.mxu0 0.0
      %330 = vmatprep.subr.mxu0 0.0
      %331 = vmatpush1.msra.mxu0 0.0
      %332 = vmatprep.subr.mxu0 0.0
      %333 = vmatpush1.msra.mxu0 0.0
      %334 = vmatprep.subr.mxu0 0.0
      %335 = vmatpush1.msra.mxu0 0.0
      %336 = vmatprep.subr.mxu0 0.0
      %337 = vmatpush1.msra.mxu0 0.0
      %338 = vmatprep.subr.mxu0 0.0
      %339 = vmatpush1.msra.mxu0 0.0
      %340 = vmatprep.subr.mxu0 0.0
      %341 = vmatpush1.msra.mxu0 0.0
      %342 = vmatprep.subr.mxu0 0.0
      %343 = vmatpush1.msra.mxu0 0.0
      %344 = vmatprep.subr.mxu0 0.0
      %345 = vmatpush1.msra.mxu0 0.0
      %346 = vmatprep.subr.mxu0 0.0
      %347 = vmatpush1.msra.mxu0 0.0
      %348 = vmatprep.subr.mxu0 0.0
      %349 = vmatpush1.msra.mxu0 0.0
      %350 = vmatprep.subr.mxu0 0.0
      %351 = vmatpush1.msra.mxu0 %v293
      %352 = vmatprep.subr.mxu0 0.0
      %353 = vmatpush1.msra.mxu0 %v292
      %354 = vmatprep.subr.mxu0 0.0
      %355 = vmatpush1.msra.mxu0 %v291
      %356 = vmatprep.subr.mxu0 0.0
      %357 = vmatpush1.msra.mxu0 %v290
      %358 = vmatprep.subr.mxu0 0.0
      %359 = vmatpush2.msra.mxu0 0.0
      %360 = vmatprep.subr.mxu0 0.0
      %361 = vmatpush2.msra.mxu0 0.0
      %362 = vmatprep.subr.mxu0 0.0
      %363 = vmatpush2.msra.mxu0 0.0
      %364 = vmatprep.subr.mxu0 0.0
      %365 = vmatpush2.msra.mxu0 0.0
      %366 = vmatprep.subr.mxu0 0.0
      %367 = vmatpush2.msra.mxu0 0.0
      %368 = vmatprep.subr.mxu0 0.0
      %369 = vmatpush2.msra.mxu0 0.0
      %370 = vmatprep.subr.mxu0 0.0
      %371 = vmatpush2.msra.mxu0 0.0
      %372 = vmatprep.subr.mxu0 0.0
      %373 = vmatpush2.msra.mxu0 0.0
      %374 = vmatprep.subr.mxu0 0.0
      %375 = vmatpush2.msra.mxu0 0.0
      %376 = vmatprep.subr.mxu0 0.0
      %377 = vmatpush2.msra.mxu0 0.0
      %378 = vmatprep.subr.mxu0 0.0
      %379 = vmatpush2.msra.mxu0 0.0
      %380 = vmatprep.subr.mxu0 0.0
      %381 = vmatpush2.msra.mxu0 0.0
      %382 = vmatprep.subr.mxu0 0.0
      %383 = vmatpush2.msra.mxu0 0.0
      %384 = vmatprep.subr.mxu0 0.0
      %385 = vmatpush2.msra.mxu0 0.0
      %386 = vmatprep.subr.mxu0 0.0
      %387 = vmatpush2.msra.mxu0 0.0
      %388 = vmatprep.subr.mxu0 0.0
      %389 = vmatpush2.msra.mxu0 0.0
      %390 = vmatprep.mubr.f32.mxu0 0.0
      %391 = vmatmul.mubr.f32.gmra.mxu0 %v303
      %v392 = vpop.f32.mrf.mxu0
      %v393 = vadd.f32 %v299, %v392
      %v394 = vpop.f32.mrf.mxu0
      %395 = vmatprep.mubr.f32.mxu0 0.0
      %396 = vmatmul.mubr.f32.gmra.mxu0 %v306
      %v397 = vpop.f32.mrf.mxu0
      %v398 = vadd.f32 %v299, %v397
      %v399 = vpop.f32.mrf.mxu0
      %400 = vmatprep.mubr.f32.mxu0 0.0
      %401 = vmatmul.mubr.f32.gmra.mxu0 %v309
      %v402 = vpop.f32.mrf.mxu0
      %v403 = vadd.f32 %v299, %v402
      %v404 = vpop.f32.mrf.mxu0
      %405 = vmatprep.mubr.f32.mxu0 0.0
      %406 = vmatmul.mubr.f32.gmra.mxu0 %v312
      %v407 = vpop.f32.mrf.mxu0
      %v408 = vadd.f32 %v299, %v407
      %v409 = vpop.f32.mrf.mxu0
      %410 = vmatprep.mubr.f32.mxu0 0.0
      %411 = vmatmul.mubr.f32.gmra.mxu0 %v315
      %v412 = vpop.f32.mrf.mxu0
      %v413 = vadd.f32 %v299, %v412
      %v414 = vpop.f32.mrf.mxu0
      %415 = vmatprep.mubr.f32.mxu0 0.0
      %416 = vmatmul.mubr.f32.gmra.mxu0 %v318
      %v417 = vpop.f32.mrf.mxu0
      %v418 = vadd.f32 %v299, %v417
      %v419 = vpop.f32.mrf.mxu0
      %420 = vmatprep.mubr.f32.mxu0 0.0
      %421 = vmatmul.mubr.f32.gmra.mxu0 %v321
      %v422 = vpop.f32.mrf.mxu0
      %v423 = vadd.f32 %v299, %v422
      %v424 = vpop.f32.mrf.mxu0
      %425 = vmatprep.mubr.f32.mxu0 0.0
      %426 = vmatmul.mubr.f32.gmra.mxu0 %v324
      %v427 = vpop.f32.mrf.mxu0
      %v428 = vadd.f32 %v299, %v427
      %v429 = vpop.f32.mrf.mxu0
      %430 = vdwg.mxu0
      %v431 = vmax.f32 %v393, 0.0
      %v432 = vmax.f32 %v398, 0.0
      %v433 = vmax.f32 %v403, 0.0
      %v434 = vmax.f32 %v408, 0.0
      %v435 = vmax.f32 %v413, 0.0
      %v436 = vmax.f32 %v418, 0.0
      %v437 = vmax.f32 %v423, 0.0
      %v438 = vmax.f32 %v428, 0.0
      %v439 = vld [vmem:[%s3] sm:$0xff]
      %v440 = vld [vmem:[%s3 + $0x8] sm:$0xff]
      %v441 = vld [vmem:[%s3 + $0x10] sm:$0xff]
      %v442 = vld [vmem:[%s3 + $0x18] sm:$0xff]
      %v443 = vld [vmem:[%s3 + $0x20] sm:$0xff]
      %v444 = vld [vmem:[%s3 + $0x28] sm:$0xff]
      %v445 = vld [vmem:[%s3 + $0x30] sm:$0xff]
      %v446 = vld [vmem:[%s3 + $0x38] sm:$0xff]
      %v447 = vld [vmem:[%s3 + $0x40] sm:$0xff]
      %v448 = vld [vmem:[%s3 + $0x48] sm:$0xff]
      %v449 = vld [vmem:[%s3 + $0x50] sm:$0xff]
      %v450 = vld [vmem:[%s3 + $0x58] sm:$0xff]
      %v451 = vld [vmem:[%s3 + $0x60] sm:$0xff]
      %v452 = vld [vmem:[%s3 + $0x68] sm:$0xff]
      %v453 = vld [vmem:[%s3 + $0x70] sm:$0xff]
      %v454 = vld [vmem:[%s3 + $0x78] sm:$0xff]
      %v455 = vld [vmem:[%s4] sm:$0x1]
      %v457 = vlaneseq
      %v458 = vshrl.u32 %v457, 7
      %v459 = vsub.s32 0, %v458
      %v460 = vrot.slane %v455, %v459
      %462 = vmatprep.subr.mxu0 0.0
      %463 = vmatpush1.msra.mxu0 %v454
      %464 = vmatprep.subr.mxu0 0.0
      %465 = vmatpush1.msra.mxu0 %v453
      %466 = vmatprep.subr.mxu0 0.0
      %467 = vmatpush1.msra.mxu0 %v452
      %468 = vmatprep.subr.mxu0 0.0
      %469 = vmatpush1.msra.mxu0 %v451
      %470 = vmatprep.subr.mxu0 0.0
      %471 = vmatpush1.msra.mxu0 %v450
      %472 = vmatprep.subr.mxu0 0.0
      %473 = vmatpush1.msra.mxu0 %v449
      %474 = vmatprep.subr.mxu0 0.0
      %475 = vmatpush1.msra.mxu0 %v448
      %476 = vmatprep.subr.mxu0 0.0
      %477 = vmatpush1.msra.mxu0 %v447
      %478 = vmatprep.subr.mxu0 0.0
      %479 = vmatpush1.msra.mxu0 %v446
      %480 = vmatprep.subr.mxu0 0.0
      %481 = vmatpush1.msra.mxu0 %v445
      %482 = vmatprep.subr.mxu0 0.0
      %483 = vmatpush1.msra.mxu0 %v444
      %484 = vmatprep.subr.mxu0 0.0
      %485 = vmatpush1.msra.mxu0 %v443
      %486 = vmatprep.subr.mxu0 0.0
      %487 = vmatpush1.msra.mxu0 %v442
      %488 = vmatprep.subr.mxu0 0.0
      %489 = vmatpush1.msra.mxu0 %v441
      %490 = vmatprep.subr.mxu0 0.0
      %491 = vmatpush1.msra.mxu0 %v440
      %492 = vmatprep.subr.mxu0 0.0
      %493 = vmatpush1.msra.mxu0 %v439
      %494 = vmatprep.subr.mxu0 0.0
      %495 = vmatpush2.msra.mxu0 0.0
      %496 = vmatprep.subr.mxu0 0.0
      %497 = vmatpush2.msra.mxu0 0.0
      %498 = vmatprep.subr.mxu0 0.0
      %499 = vmatpush2.msra.mxu0 0.0
      %500 = vmatprep.subr.mxu0 0.0
      %501 = vmatpush2.msra.mxu0 0.0
      %502 = vmatprep.subr.mxu0 0.0
      %503 = vmatpush2.msra.mxu0 0.0
      %504 = vmatprep.subr.mxu0 0.0
      %505 = vmatpush2.msra.mxu0 0.0
      %506 = vmatprep.subr.mxu0 0.0
      %507 = vmatpush2.msra.mxu0 0.0
      %508 = vmatprep.subr.mxu0 0.0
      %509 = vmatpush2.msra.mxu0 0.0
      %510 = vmatprep.subr.mxu0 0.0
      %511 = vmatpush2.msra.mxu0 0.0
      %512 = vmatprep.subr.mxu0 0.0
      %513 = vmatpush2.msra.mxu0 0.0
      %514 = vmatprep.subr.mxu0 0.0
      %515 = vmatpush2.msra.mxu0 0.0
      %516 = vmatprep.subr.mxu0 0.0
      %517 = vmatpush2.msra.mxu0 0.0
      %518 = vmatprep.subr.mxu0 0.0
      %519 = vmatpush2.msra.mxu0 0.0
      %520 = vmatprep.subr.mxu0 0.0
      %521 = vmatpush2.msra.mxu0 0.0
      %522 = vmatprep.subr.mxu0 0.0
      %523 = vmatpush2.msra.mxu0 0.0
      %524 = vmatprep.subr.mxu0 0.0
      %525 = vmatpush2.msra.mxu0 0.0
      %526 = vmatprep.mubr.f32.mxu0 0.0
      %527 = vmatmul.mubr.f32.gmra.mxu0 %v431
      %v528 = vpop.f32.mrf.mxu0
      %v529 = vadd.f32 %v460, %v528
      %v530 = vpop.f32.mrf.mxu0
      %531 = vmatprep.mubr.f32.mxu0 0.0
      %532 = vmatmul.mubr.f32.gmra.mxu0 %v432
      %v533 = vpop.f32.mrf.mxu0
      %v534 = vadd.f32 %v460, %v533
      %v535 = vpop.f32.mrf.mxu0
      %536 = vmatprep.mubr.f32.mxu0 0.0
      %537 = vmatmul.mubr.f32.gmra.mxu0 %v433
      %v538 = vpop.f32.mrf.mxu0
      %v539 = vadd.f32 %v460, %v538
      %v540 = vpop.f32.mrf.mxu0
      %541 = vmatprep.mubr.f32.mxu0 0.0
      %542 = vmatmul.mubr.f32.gmra.mxu0 %v434
      %v543 = vpop.f32.mrf.mxu0
      %v544 = vadd.f32 %v460, %v543
      %v545 = vpop.f32.mrf.mxu0
      %546 = vmatprep.mubr.f32.mxu0 0.0
      %547 = vmatmul.mubr.f32.gmra.mxu0 %v435
      %v548 = vpop.f32.mrf.mxu0
      %v549 = vadd.f32 %v460, %v548
      %v550 = vpop.f32.mrf.mxu0
      %551 = vmatprep.mubr.f32.mxu0 0.0
      %552 = vmatmul.mubr.f32.gmra.mxu0 %v436
      %v553 = vpop.f32.mrf.mxu0
      %v554 = vadd.f32 %v460, %v553
      %v555 = vpop.f32.mrf.mxu0
      %556 = vmatprep.mubr.f32.mxu0 0.0
      %557 = vmatmul.mubr.f32.gmra.mxu0 %v437
      %v558 = vpop.f32.mrf.mxu0
      %v559 = vadd.f32 %v460, %v558
      %v560 = vpop.f32.mrf.mxu0
      %561 = vmatprep.mubr.f32.mxu0 0.0
      %562 = vmatmul.mubr.f32.gmra.mxu0 %v438
      %v563 = vpop.f32.mrf.mxu0
      %v564 = vadd.f32 %v460, %v563
      %v565 = vpop.f32.mrf.mxu0
      %566 = vdwg.mxu0
      %v567 = vmax.f32 %v529, 0.0
      %v568 = vmax.f32 %v534, 0.0
      %v569 = vmax.f32 %v539, 0.0
      %v570 = vmax.f32 %v544, 0.0
      %v571 = vmax.f32 %v549, 0.0
      %v572 = vmax.f32 %v554, 0.0
      %v573 = vmax.f32 %v559, 0.0
      %v574 = vmax.f32 %v564, 0.0
      %v575 = vld [vmem:[%s5] sm:$0xff]
      %v576 = vld [vmem:[%s5 + $0x8] sm:$0xff]
      %v577 = vld [vmem:[%s5 + $0x10] sm:$0xff]
      %v578 = vld [vmem:[%s5 + $0x18] sm:$0xff]
      %v579 = vld [vmem:[%s5 + $0x20] sm:$0xff]
      %v580 = vld [vmem:[%s5 + $0x28] sm:$0xff]
      %v581 = vld [vmem:[%s5 + $0x30] sm:$0xff]
      %v582 = vld [vmem:[%s5 + $0x38] sm:$0xff]
      %v583 = vld [vmem:[%s5 + $0x40] sm:$0xff]
      %v584 = vld [vmem:[%s5 + $0x48] sm:$0xff]
      %v585 = vld [vmem:[%s5 + $0x50] sm:$0xff]
      %v586 = vld [vmem:[%s5 + $0x58] sm:$0xff]
      %v587 = vld [vmem:[%s5 + $0x60] sm:$0xff]
      %v588 = vld [vmem:[%s5 + $0x68] sm:$0xff]
      %v589 = vld [vmem:[%s5 + $0x70] sm:$0xff]
      %v590 = vld [vmem:[%s5 + $0x78] sm:$0xff]
      %v591 = vld [vmem:[%s6] sm:$0x1]
      %v593 = vlaneseq
      %v594 = vshrl.u32 %v593, 7
      %v595 = vsub.s32 0, %v594
      %v596 = vrot.slane %v591, %v595
      %598 = vmatprep.subr.mxu0 0.0
      %599 = vmatpush1.msra.mxu0 %v590
      %600 = vmatprep.subr.mxu0 0.0
      %601 = vmatpush1.msra.mxu0 %v589
      %602 = vmatprep.subr.mxu0 0.0
      %603 = vmatpush1.msra.mxu0 %v588
      %604 = vmatprep.subr.mxu0 0.0
      %605 = vmatpush1.msra.mxu0 %v587
      %606 = vmatprep.subr.mxu0 0.0
      %607 = vmatpush1.msra.mxu0 %v586
      %608 = vmatprep.subr.mxu0 0.0
      %609 = vmatpush1.msra.mxu0 %v585
      %610 = vmatprep.subr.mxu0 0.0
      %611 = vmatpush1.msra.mxu0 %v584
      %612 = vmatprep.subr.mxu0 0.0
      %613 = vmatpush1.msra.mxu0 %v583
      %614 = vmatprep.subr.mxu0 0.0
      %615 = vmatpush1.msra.mxu0 %v582
      %616 = vmatprep.subr.mxu0 0.0
      %617 = vmatpush1.msra.mxu0 %v581
      %618 = vmatprep.subr.mxu0 0.0
      %619 = vmatpush1.msra.mxu0 %v580
      %620 = vmatprep.subr.mxu0 0.0
      %621 = vmatpush1.msra.mxu0 %v579
      %622 = vmatprep.subr.mxu0 0.0
      %623 = vmatpush1.msra.mxu0 %v578
      %624 = vmatprep.subr.mxu0 0.0
      %625 = vmatpush1.msra.mxu0 %v577
      %626 = vmatprep.subr.mxu0 0.0
      %627 = vmatpush1.msra.mxu0 %v576
      %628 = vmatprep.subr.mxu0 0.0
      %629 = vmatpush1.msra.mxu0 %v575
      %630 = vmatprep.subr.mxu0 0.0
      %631 = vmatpush2.msra.mxu0 0.0
      %632 = vmatprep.subr.mxu0 0.0
      %633 = vmatpush2.msra.mxu0 0.0
      %634 = vmatprep.subr.mxu0 0.0
      %635 = vmatpush2.msra.mxu0 0.0
      %636 = vmatprep.subr.mxu0 0.0
      %637 = vmatpush2.msra.mxu0 0.0
      %638 = vmatprep.subr.mxu0 0.0
      %639 = vmatpush2.msra.mxu0 0.0
      %640 = vmatprep.subr.mxu0 0.0
      %641 = vmatpush2.msra.mxu0 0.0
      %642 = vmatprep.subr.mxu0 0.0
      %643 = vmatpush2.msra.mxu0 0.0
      %644 = vmatprep.subr.mxu0 0.0
      %645 = vmatpush2.msra.mxu0 0.0
      %646 = vmatprep.subr.mxu0 0.0
      %647 = vmatpush2.msra.mxu0 0.0
      %648 = vmatprep.subr.mxu0 0.0
      %649 = vmatpush2.msra.mxu0 0.0
      %650 = vmatprep.subr.mxu0 0.0
      %651 = vmatpush2.msra.mxu0 0.0
      %652 = vmatprep.subr.mxu0 0.0
      %653 = vmatpush2.msra.mxu0 0.0
      %654 = vmatprep.subr.mxu0 0.0
      %655 = vmatpush2.msra.mxu0 0.0
      %656 = vmatprep.subr.mxu0 0.0
      %657 = vmatpush2.msra.mxu0 0.0
      %658 = vmatprep.subr.mxu0 0.0
      %659 = vmatpush2.msra.mxu0 0.0
      %660 = vmatprep.subr.mxu0 0.0
      %661 = vmatpush2.msra.mxu0 0.0
      %662 = vmatprep.mubr.f32.mxu0 0.0
      %663 = vmatmul.mubr.f32.gmra.mxu0 %v567
      %v664 = vpop.f32.mrf.mxu0
      %v665 = vadd.f32 %v596, %v664
      %v666 = vpop.f32.mrf.mxu0
      %667 = vmatprep.mubr.f32.mxu0 0.0
      %668 = vmatmul.mubr.f32.gmra.mxu0 %v568
      %v669 = vpop.f32.mrf.mxu0
      %v670 = vadd.f32 %v596, %v669
      %v671 = vpop.f32.mrf.mxu0
      %672 = vmatprep.mubr.f32.mxu0 0.0
      %673 = vmatmul.mubr.f32.gmra.mxu0 %v569
      %v674 = vpop.f32.mrf.mxu0
      %v675 = vadd.f32 %v596, %v674
      %v676 = vpop.f32.mrf.mxu0
      %677 = vmatprep.mubr.f32.mxu0 0.0
      %678 = vmatmul.mubr.f32.gmra.mxu0 %v570
      %v679 = vpop.f32.mrf.mxu0
      %v680 = vadd.f32 %v596, %v679
      %v681 = vpop.f32.mrf.mxu0
      %682 = vmatprep.mubr.f32.mxu0 0.0
      %683 = vmatmul.mubr.f32.gmra.mxu0 %v571
      %v684 = vpop.f32.mrf.mxu0
      %v685 = vadd.f32 %v596, %v684
      %v686 = vpop.f32.mrf.mxu0
      %687 = vmatprep.mubr.f32.mxu0 0.0
      %688 = vmatmul.mubr.f32.gmra.mxu0 %v572
      %v689 = vpop.f32.mrf.mxu0
      %v690 = vadd.f32 %v596, %v689
      %v691 = vpop.f32.mrf.mxu0
      %692 = vmatprep.mubr.f32.mxu0 0.0
      %693 = vmatmul.mubr.f32.gmra.mxu0 %v573
      %v694 = vpop.f32.mrf.mxu0
      %v695 = vadd.f32 %v596, %v694
      %v696 = vpop.f32.mrf.mxu0
      %697 = vmatprep.mubr.f32.mxu0 0.0
      %698 = vmatmul.mubr.f32.gmra.mxu0 %v574
      %v699 = vpop.f32.mrf.mxu0
      %v700 = vadd.f32 %v596, %v699
      %v701 = vpop.f32.mrf.mxu0
      %702 = vdwg.mxu0
      %vm703 = vcmask 64512
      %704 = vst.msk [vmem:[%s280] sm:$0xff] %vm703, %v665
      %705 = vst.msk [vmem:[%s280 + $0x8] sm:$0xff] %vm703, %v670
      %706 = vst.msk [vmem:[%s280 + $0x10] sm:$0xff] %vm703, %v675
      %707 = vst.msk [vmem:[%s280 + $0x18] sm:$0xff] %vm703, %v680
      %708 = vst.msk [vmem:[%s280 + $0x20] sm:$0xff] %vm703, %v685
      %709 = vst.msk [vmem:[%s280 + $0x28] sm:$0xff] %vm703, %v690
      %710 = vst.msk [vmem:[%s280 + $0x30] sm:$0xff] %vm703, %v695
      %711 = vst.msk [vmem:[%s280 + $0x38] sm:$0xff] %vm703, %v700
      %s712 = smul.u32 8, %s18
      %p713 = scmp.lt.s32.totalorder %s712, 31
      %s714 = scalar_select %p713, %s712, 31
      %s715 = smul.addr %s714, 8
      %s716 = scalar_lea.vmem %s7, %s715
      // Predicated region
      $region49: #{tpu_custom_call.1} parent=47 // pred_check
        %p717 = pneg %p188
      $region50: #{tpu_custom_call.1} parent=47 // pred_check_branch
        %719 = sbr.rel (%p717) target = $region52
      $region51: #{tpu_custom_call.1} parent=47 // pred_region
        %s720 = smul.u32 8, %s18
      $region52: #{tpu_custom_call.1} parent=47 // pred_fallthru
        _
    $region48: #{tpu_custom_call.1} parent=5 // pred_fallthru
      _
    %p721 = scmp.le.s32.totalorder 2, %s13
    // Predicated region
    $region53: #{tpu_custom_call.1} parent=5 // pred_check
      %p722 = pneg %p721
    $region54: #{tpu_custom_call.1} parent=5 // pred_check_branch
      %724 = sbr.rel (%p722) target = $region56
    $region55: #{tpu_custom_call.1} parent=5 // pred_region
      %s725 = ssub.s32 %s13, 2
      // Predicated region
      $region57: #{tpu_custom_call.1} parent=55 // pred_check
        %p726 = pneg %p194
      $region58: #{tpu_custom_call.1} parent=55 // pred_check_branch
        %728 = sbr.rel (%p726) target = $region60
      $region59: #{tpu_custom_call.1} parent=55 // pred_region
        %s729 = smul.u32 8, %s19
        %p730 = scmp.lt.s32.totalorder %s729, 31
        %s731 = scalar_select %p730, %s729, 31
        %s732 = smul.addr %s731, 8
        %s733 = scalar_lea.vmem %s7, %s732
      $region60: #{tpu_custom_call.1} parent=55 // pred_fallthru
        _
    $region56: #{tpu_custom_call.1} parent=5 // pred_fallthru
      _
  $region6: #{tpu_custom_call.1} parent=0 // loop_footer
    %s17 = sadd.s32 1, %s13
  $region7: #{tpu_custom_call.1} parent=0 // loop_footer_branch
    %12 = sbr.rel target = $region3
  $region8: #{tpu_custom_call.1} parent=0 // loop_exit
    _

</llo_original>
